<compile_context>
chip_gen: v6e
topology: v6e:2x2x1
jax: 0.10.0
libtpu: 0.0.40
codegen_flags: <defaults>
</compile_context>

<pallas_src>
import jax
import jax.numpy as jnp
from jax import lax
from jax.experimental import pallas as pl
from jax.experimental.pallas import tpu as pltpu


def _round_up(x, m):
    return ((x + m - 1) // m) * m


def _zero_pad(x, shape):
    pads = [(0, t - s) for s, t in zip(x.shape, shape)]
    return jnp.pad(x, pads)


# --------------------------------------------------------------------------
# Kernel
# --------------------------------------------------------------------------
def equivariant_mp_kernel(idx_ref, colT_ref, dist_ref, node_ref,
                          w_msg_node_ref, w_msg_dist_ref,
                          w_upd_aggr_ref, w_node_fin_ref,
                          out_ref, nodeproj_sc, aggr_sc):
    e_step = pl.program_id(0)
    n_pad = node_ref.shape[0]          # Np (padded node count, multiple of 8)
    te = dist_ref.shape[0]             # edge tile size
    hp = aggr_sc.shape[1]              # padded hidden width (multiple of 128)

    # ---- step 0: project node embeddings once (bias folded via the ones
    # column); store stacked [P_src ; P_tgt] in bf16; zero the accumulator.
    @pl.when(e_step == 0)
    def _init():
        p = jnp.dot(node_ref[...], w_msg_node_ref[...],
                    preferred_element_type=jnp.float32)          # [Np, 2*Hp]
        nodeproj_sc[0:n_pad, :] = p[:, :hp].astype(jnp.bfloat16)     # P_src+b
        nodeproj_sc[n_pad:2 * n_pad, :] = p[:, hp:].astype(jnp.bfloat16)
        aggr_sc[...] = jnp.zeros_like(aggr_sc)

    idx = idx_ref[...]                 # [TE, 2] i32: (row, col) per edge
    row = idx[:, 0:1]                  # [TE, 1] source index
    col = idx[:, 1:2]                  # [TE, 1] target index
    colT = colT_ref[...]               # [1, TE] target index (lane layout)
    dist = dist_ref[...]               # [TE, 1] f32

    # Fused gather one-hot [TE, 2*Np]: hit row[e] in the first half and
    # col[e]+Np in the second half.  Padded edges (row=2*Np, col=Np) match
    # nothing -> all-zero rows.  0/1 values are exact in bf16.
    iota2 = lax.broadcasted_iota(jnp.int32, (te, 2 * n_pad), 1)
    onehot = jnp.logical_or(iota2 == row,
                            iota2 == (col + n_pad)).astype(jnp.bfloat16)

    # message_mlp: one [TE,2Np]@[2Np,Hp] contraction (src+tgt+bias gathered
    # in one shot), plus the rank-1 distance term, then ReLU (f32 epilogue).
    msg_pre = jnp.dot(onehot, nodeproj_sc[...],
                      preferred_element_type=jnp.float32)        # [TE, Hp]
    msg_pre = msg_pre + dist * w_msg_dist_ref[...]
    msg = jnp.maximum(msg_pre, 0.0)

    # scatter(messages, col, reduce='sum') == scatter_t @ msg, accumulated
    # in f32.  scatter_t built directly transposed [Np, TE] (no XLU transpose);
    # padded edges give all-zero columns so they are dropped exactly.
    scatter_t = (lax.broadcasted_iota(jnp.int32, (n_pad, te), 0)
                 == colT).astype(jnp.bfloat16)                   # [Np, TE]
    aggr_sc[...] = aggr_sc[...] + jnp.dot(scatter_t, msg.astype(jnp.bfloat16),
                                          preferred_element_type=jnp.float32)

    # ---- last step: node update MLP + residual projection (runs once; keep
    # these small matmuls in f32 for accuracy).
    @pl.when(e_step == pl.num_programs(0) - 1)
    def _finalize():
        # [Np, 2*Hp] = node_aug @ [W_upd_node | W_res] (+ b_upd folded into
        # the left half via the ones column; residual half is bias-free).
        node_fin = jnp.dot(node_ref[...], w_node_fin_ref[...],
                           preferred_element_type=jnp.float32)
        upd_pre = node_fin[:, :hp] + jnp.dot(aggr_sc[...], w_upd_aggr_ref[...],
                                             preferred_element_type=jnp.float32)
        out_ref[...] = node_fin[:, hp:] + jnp.maximum(upd_pre, 0.0)


# --------------------------------------------------------------------------
# One-time weight preparation (hoisted out of the per-call path)
# --------------------------------------------------------------------------
def prepare_params(params, in_channels):
    c = in_channels
    h = params["b_msg"].shape[0]
    # Lane-dense hidden width.  (On v6e/v7x with H > 128 one could round to
    # 256 for full MXU width; 128 keeps v5e perfectly matched.)
    hp = _round_up(h, 128)

    w_msg = params["w_msg"].astype(jnp.float32)               # [H, 2C+1]
    w_msg_src = _zero_pad(w_msg[:, :c].T, (c, hp))
    w_msg_tgt = _zero_pad(w_msg[:, c:2 * c].T, (c, hp))
    b_msg = _zero_pad(params["b_msg"].astype(jnp.float32).reshape(1, h), (1, hp))
    # Bias folded into the src half via the appended ones column on node_aug.
    w_msg_node = jnp.concatenate(
        [jnp.concatenate([w_msg_src, w_msg_tgt], axis=1),
         jnp.concatenate([b_msg, jnp.zeros((1, hp), jnp.float32)], axis=1)],
        axis=0)                                                # [C+1, 2*Hp]
    w_msg_dist = _zero_pad(w_msg[:, 2 * c:].T, (1, hp))        # [1, Hp]

    w_upd = params["w_upd"].astype(jnp.float32)                # [H, C+H]
    w_upd_node = _zero_pad(w_upd[:, :c].T, (c, hp))
    w_upd_aggr = _zero_pad(w_upd[:, c:].T, (hp, hp))           # [Hp, Hp]
    b_upd = _zero_pad(params["b_upd"].astype(jnp.float32).reshape(1, h), (1, hp))
    w_res = _zero_pad(params["w_res"].astype(jnp.float32).T, (c, hp))
    # [W_upd_node | W_res] with b_upd folded into the left half (residual
    # projection stays bias-free, matching nn.Linear(..., bias=False)).
    w_node_fin = jnp.concatenate(
        [jnp.concatenate([w_upd_node, w_res], axis=1),
         jnp.concatenate([b_upd, jnp.zeros((1, hp), jnp.float32)], axis=1)],
        axis=0)                                                # [C+1, 2*Hp]

    return dict(w_msg_node=w_msg_node, w_msg_dist=w_msg_dist,
                w_upd_aggr=w_upd_aggr, w_node_fin=w_node_fin, H=h, Hp=hp)


def _vmem_budget_bytes(n_pad, c_aug, hp, te):
    f32, bf16 = 4, 2
    resident = (2 * c_aug * 2 * hp * f32        # the two [C+1, 2*Hp] weights
                + hp * f32                      # w_msg_dist
                + hp * hp * f32                 # w_upd_aggr
                + n_pad * c_aug * f32)          # node_aug
    per_step = te * (2 + 1 + 1) * 4             # idx(2xi32) + colT(i32) + dist(f32)
    scratch = 2 * n_pad * hp * bf16 + n_pad * hp * f32
    out = n_pad * hp * f32
    temps = (te * 2 * n_pad * bf16              # fused gather one-hot
             + n_pad * te * bf16                # scatter_t
             + te * hp * (f32 + bf16)           # msg (f32 + bf16 copy)
             + n_pad * 2 * hp * f32)            # step-0 / finalize projection
    # double-buffered pipelined blocks + headroom for compiler temporaries
    return 2 * (resident + 2 * per_step + out) + scratch + 2 * temps


# --------------------------------------------------------------------------
# Wrapper
# --------------------------------------------------------------------------
def equivariant_mp_layer(node_embed, edge_dist, edge_index, prepped,
                         *, edge_tile=512):
    node_embed = node_embed.astype(jnp.float32)
    n, c = node_embed.shape
    e = edge_dist.shape[0]
    h, hp = prepped["H"], prepped["Hp"]

    # Sublane-aligned node count; append ones column (bias folding), zero-pad.
    n_pad = _round_up(max(n, 8), 8)
    node_aug = jnp.concatenate([node_embed, jnp.ones((n, 1), jnp.float32)], axis=1)
    node_aug = _zero_pad(node_aug, (n_pad, c + 1))
    c_aug = c + 1

    # Edge tiling: TE multiple of 16 (bf16 sublane packing); pad E to G*TE.
    te = min(edge_tile, _round_up(max(e, 1), 16))
    te = _round_up(te, 16)
    g = max(1, pl.cdiv(e, te))
    e_pad = g * te

    row = edge_index[0].astype(jnp.int32)
    col = edge_index[1].astype(jnp.int32)
    dist = edge_dist.reshape(e).astype(jnp.float32)
    # Padded edges: row=2*Np and col=Np are out of range of the gather iota
    # and give an all-zero scatter column, so they are dropped exactly.
    row_p = jnp.concatenate([row, jnp.full((e_pad - e,), 2 * n_pad, jnp.int32)])
    col_p = jnp.concatenate([col, jnp.full((e_pad - e,), n_pad, jnp.int32)])
    dist_p = jnp.concatenate([dist, jnp.zeros((e_pad - e,), jnp.float32)])

    idx3 = jnp.stack([row_p, col_p], axis=-1).reshape(g, te, 2)    # packed
    colt3 = col_p.reshape(g, 1, te)
    dist3 = dist_p.reshape(g, te, 1)

    inputs = (idx3, colt3, dist3, node_aug,
              prepped["w_msg_node"], prepped["w_msg_dist"],
              prepped["w_upd_aggr"], prepped["w_node_fin"])

    def resident(shape):
        return pl.BlockSpec(shape, lambda i: (0,) * len(shape))

    in_specs = [
        pl.BlockSpec((None, te, 2), lambda i: (i, 0, 0)),   # (row, col)
        pl.BlockSpec((None, 1, te), lambda i: (i, 0, 0)),   # colT
        pl.BlockSpec((None, te, 1), lambda i: (i, 0, 0)),   # dist
        resident((n_pad, c_aug)),                           # node_aug
        resident((c_aug, 2 * hp)),                          # [W_src|W_tgt]+b
        resident((1, hp)),                                  # W_msg_dist
        resident((hp, hp)),                                 # W_upd_aggr
        resident((c_aug, 2 * hp)),                          # [W_upd|W_res]+b
    ]

    flops = (2 * e_pad * 2 * n_pad * hp        # fused gather matmul
             + 2 * e_pad * n_pad * hp          # scatter matmul
             + 2 * 2 * n_pad * c_aug * 2 * hp  # the two node projections
             + 2 * n_pad * hp * hp)            # aggr @ W_upd_aggr
    bytes_accessed = int(sum(x.size * x.dtype.itemsize for x in inputs)
                         + n_pad * hp * 4)

    vmem_limit = int(min(max(_vmem_budget_bytes(n_pad, c_aug, hp, te),
                             32 * 1024 * 1024), 96 * 1024 * 1024))

    out_padded = pl.pallas_call(
        equivariant_mp_kernel,
        out_shape=jax.ShapeDtypeStruct((n_pad, hp), jnp.float32),
        grid=(g,),
        in_specs=in_specs,
        out_specs=pl.BlockSpec((n_pad, hp), lambda i: (0, 0)),
        scratch_shapes=[pltpu.VMEM((2 * n_pad, hp), jnp.bfloat16),  # [P_src;P_tgt]
                        pltpu.VMEM((n_pad, hp), jnp.float32)],      # aggregation
        compiler_params=pltpu.CompilerParams(
            dimension_semantics=("arbitrary",),        # edge axis carries state
            vmem_limit_bytes=vmem_limit),
        cost_estimate=pl.CostEstimate(flops=flops, transcendentals=0,
                                      bytes_accessed=bytes_accessed),
    )(*inputs)

    return out_padded[:n, :h]


# --------------------------------------------------------------------------
# Pure-JAX reference mirroring the PyTorch forward (act = ReLU)
# --------------------------------------------------------------------------
def reference_forward(node_embed, edge_dist, edge_index, params):
    row, col = edge_index[0], edge_index[1]
    src = node_embed[row]
    tgt = node_embed[col]
    msg_in = jnp.concatenate([src, tgt, edge_dist], axis=-1)
    msg = jax.nn.relu(msg_in @ params["w_msg"].T + params["b_msg"])
    n = node_embed.shape[0]
    aggr = jnp.zeros((n, msg.shape[-1]), jnp.float32).at[col].add(msg)
    upd_in = jnp.concatenate([node_embed, aggr], axis=-1)
    upd = jax.nn.relu(upd_in @ params["w_upd"].T + params["b_upd"])
    res = node_embed @ params["w_res"].T
    return res + upd


if __name__ == "__main__":
    N, C, H = 16, 4, 32          # nodes, in_channels, hidden_channels
    key = jax.random.PRNGKey(0)
    k_node, k_dist, k_wm, k_bm, k_wu, k_bu, k_wr = jax.random.split(key, 7)

    # Graph: bidirectional ring so every node appears as a target (col) index.
    rows = jnp.concatenate([jnp.arange(N), (jnp.arange(N) + 1) % N]).astype(jnp.int32)
    cols = jnp.concatenate([(jnp.arange(N) + 1) % N, jnp.arange(N)]).astype(jnp.int32)
    edge_index = jnp.stack([rows, cols])                       # [2, E], E = 2N
    E = edge_index.shape[1]

    node_embed = jax.random.normal(k_node, (N, C), jnp.float32)
    edge_dist = jax.random.uniform(k_dist, (E, 1), jnp.float32)

    # Deterministic parameter init (PyTorch layout: weight [out, in]).
    params = {
        "w_msg": 0.1 * jax.random.normal(k_wm, (H, 2 * C + 1), jnp.float32),
        "b_msg": 0.1 * jax.random.normal(k_bm, (H,), jnp.float32),
        "w_upd": 0.1 * jax.random.normal(k_wu, (H, C + H), jnp.float32),
        "b_upd": 0.1 * jax.random.normal(k_bu, (H,), jnp.float32),
        "w_res": 0.1 * jax.random.normal(k_wr, (H, C), jnp.float32),
    }

    # Weight re-layout done once (hoisted out of the per-call path).
    prepped = prepare_params(params, in_channels=C)

    # edge_tile=16 -> 2 edge steps, exercising accumulation across grid steps.
    out = equivariant_mp_layer(node_embed, edge_dist, edge_index, prepped,
                               edge_tile=16)
    out = jax.block_until_ready(out)

    ref = reference_forward(node_embed, edge_dist, edge_index, params)
    assert out.shape == (N, H)
    # bf16 MXU operands -> slightly looser tolerance than pure f32.
    assert jnp.allclose(out, ref, rtol=3e-2, atol=3e-2), "mismatch vs reference"

    print("KERNEL_OK")
</pallas_src>

<mosaic_0001>
module attributes {stable_mosaic.version = 11 : i64} {
  func.func @equivariant_mp_kernel(%arg0: i32, %arg1: memref<1x16x2xi32, #tpu.memory_space<vmem>>, %arg2: memref<1x1x16xi32, #tpu.memory_space<vmem>>, %arg3: memref<1x16x1xf32, #tpu.memory_space<vmem>>, %arg4: memref<16x5xf32, #tpu.memory_space<vmem>>, %arg5: memref<5x256xf32, #tpu.memory_space<vmem>>, %arg6: memref<1x128xf32, #tpu.memory_space<vmem>>, %arg7: memref<128x128xf32, #tpu.memory_space<vmem>>, %arg8: memref<5x256xf32, #tpu.memory_space<vmem>>, %arg9: memref<16x128xf32, #tpu.memory_space<vmem>>, %arg10: memref<32x128xbf16, #tpu.memory_space<vmem>>, %arg11: memref<16x128xf32, #tpu.memory_space<vmem>>) attributes {dimension_semantics = [#tpu.dimension_semantics<arbitrary>], iteration_bounds = array<i64: 2>, scalar_prefetch = 0 : i64, scratch_operands = 2 : i64, tpu.core_type = #tpu.core_type<tc>, window_params = [{transform_indices = @transform_0, window_bounds = array<i64: 1, 16, 2>}, {transform_indices = @transform_1, window_bounds = array<i64: 1, 1, 16>}, {transform_indices = @transform_2, window_bounds = array<i64: 1, 16, 1>}, {pipeline_mode = #tpu.pipeline_mode<synchronous>, transform_indices = @transform_3, window_bounds = array<i64: 16, 5>}, {pipeline_mode = #tpu.pipeline_mode<synchronous>, transform_indices = @transform_4, window_bounds = array<i64: 5, 256>}, {pipeline_mode = #tpu.pipeline_mode<synchronous>, transform_indices = @transform_5, window_bounds = array<i64: 1, 128>}, {pipeline_mode = #tpu.pipeline_mode<synchronous>, transform_indices = @transform_6, window_bounds = array<i64: 128, 128>}, {pipeline_mode = #tpu.pipeline_mode<synchronous>, transform_indices = @transform_7, window_bounds = array<i64: 5, 256>}, {pipeline_mode = #tpu.pipeline_mode<synchronous>, transform_indices = @transform_8, window_bounds = array<i64: 16, 128>}]} {
    %c0_i32 = arith.constant 0 : i32
    %0 = arith.cmpi eq, %arg0, %c0_i32 : i32
    %1 = arith.extui %0 : i1 to i32
    %c0_i32_0 = arith.constant 0 : i32
    %2 = arith.cmpi ne, %1, %c0_i32_0 : i32
    scf.if %2 {
      %c0_20 = arith.constant 0 : index
      %c0_21 = arith.constant 0 : index
      %45 = vector.load %arg4[%c0_20, %c0_21] : memref<16x5xf32, #tpu.memory_space<vmem>>, vector<16x5xf32>
      %c0_22 = arith.constant 0 : index
      %c0_23 = arith.constant 0 : index
      %46 = vector.load %arg5[%c0_22, %c0_23] : memref<5x256xf32, #tpu.memory_space<vmem>>, vector<5x256xf32>
      %cst_24 = arith.constant dense<0.000000e+00> : vector<16x256xf32>
      %47 = tpu.matmul %45, %46, %cst_24 {dimension_numbers = #tpu.dot_dimension_numbers<[1], [0], [0], [1], [0, 0, 1, 1], [], []>} : vector<16x5xf32>, vector<5x256xf32>, vector<16x256xf32> -> vector<16x256xf32>
      %48 = vector.extract_strided_slice %47 {offsets = [0, 0], sizes = [16, 128], strides = [1, 1]} : vector<16x256xf32> to vector<16x128xf32>
      %49 = arith.truncf %48 : vector<16x128xf32> to vector<16x128xbf16>
      %c0_25 = arith.constant 0 : index
      %c0_26 = arith.constant 0 : index
      %50 = vector.load %arg10[%c0_25, %c0_26] : memref<32x128xbf16, #tpu.memory_space<vmem>>, vector<16x128xbf16>
      tpu.vector_store %arg10[%c0_25, %c0_26], %49 {strides = array<i32>} : memref<32x128xbf16, #tpu.memory_space<vmem>>, vector<16x128xbf16>,
      %51 = vector.extract_strided_slice %47 {offsets = [0, 128], sizes = [16, 128], strides = [1, 1]} : vector<16x256xf32> to vector<16x128xf32>
      %52 = arith.truncf %51 : vector<16x128xf32> to vector<16x128xbf16>
      %c16 = arith.constant 16 : index
      %c0_27 = arith.constant 0 : index
      %53 = vector.load %arg10[%c16, %c0_27] : memref<32x128xbf16, #tpu.memory_space<vmem>>, vector<16x128xbf16>
      tpu.vector_store %arg10[%c16, %c0_27], %52 {strides = array<i32>} : memref<32x128xbf16, #tpu.memory_space<vmem>>, vector<16x128xbf16>,
      %cst_28 = arith.constant 0.000000e+00 : f32
      %54 = vector.broadcast %cst_28 : f32 to vector<16x128xf32>
      %c0_29 = arith.constant 0 : index
      %c0_30 = arith.constant 0 : index
      %55 = vector.load %arg11[%c0_29, %c0_30] : memref<16x128xf32, #tpu.memory_space<vmem>>, vector<16x128xf32>
      tpu.vector_store %arg11[%c0_29, %c0_30], %54 {strides = array<i32>} : memref<16x128xf32, #tpu.memory_space<vmem>>, vector<16x128xf32>,
    } else {
    }
    %c0 = arith.constant 0 : index
    %c0_1 = arith.constant 0 : index
    %c0_2 = arith.constant 0 : index
    %3 = vector.load %arg1[%c0, %c0_1, %c0_2] : memref<1x16x2xi32, #tpu.memory_space<vmem>>, vector<1x16x2xi32>
    %4 = vector.shape_cast %3 : vector<1x16x2xi32> to vector<16x2xi32>
    %5 = vector.extract_strided_slice %4 {offsets = [0, 0], sizes = [16, 1], strides = [1, 1]} : vector<16x2xi32> to vector<16x1xi32>
    %6 = vector.extract_strided_slice %4 {offsets = [0, 1], sizes = [16, 1], strides = [1, 1]} : vector<16x2xi32> to vector<16x1xi32>
    %c0_3 = arith.constant 0 : index
    %c0_4 = arith.constant 0 : index
    %c0_5 = arith.constant 0 : index
    %7 = vector.load %arg2[%c0_3, %c0_4, %c0_5] : memref<1x1x16xi32, #tpu.memory_space<vmem>>, vector<1x1x16xi32>
    %8 = vector.shape_cast %7 : vector<1x1x16xi32> to vector<1x16xi32>
    %c0_6 = arith.constant 0 : index
    %c0_7 = arith.constant 0 : index
    %c0_8 = arith.constant 0 : index
    %9 = vector.load %arg3[%c0_6, %c0_7, %c0_8] : memref<1x16x1xf32, #tpu.memory_space<vmem>>, vector<1x16x1xf32>
    %10 = vector.shape_cast %9 : vector<1x16x1xf32> to vector<16x1xf32>
    %11 = tpu.iota {dimensions = array<i32: 1>} : vector<16x32xi32>
    %12 = vector.broadcast %5 : vector<16x1xi32> to vector<16x32xi32>
    %13 = arith.cmpi eq, %11, %12 : vector<16x32xi32>
    %c16_i32 = arith.constant 16 : i32
    %14 = vector.broadcast %c16_i32 : i32 to vector<16x1xi32>
    %15 = arith.addi %6, %14 : vector<16x1xi32>
    %16 = vector.broadcast %15 : vector<16x1xi32> to vector<16x32xi32>
    %17 = arith.cmpi eq, %11, %16 : vector<16x32xi32>
    %18 = arith.ori %13, %17 : vector<16x32xi1>
    %19 = arith.extui %18 : vector<16x32xi1> to vector<16x32xi32>
    %20 = arith.sitofp %19 : vector<16x32xi32> to vector<16x32xf32>
    %21 = arith.truncf %20 : vector<16x32xf32> to vector<16x32xbf16>
    %c0_9 = arith.constant 0 : index
    %c0_10 = arith.constant 0 : index
    %22 = vector.load %arg10[%c0_9, %c0_10] : memref<32x128xbf16, #tpu.memory_space<vmem>>, vector<32x128xbf16>
    %cst = arith.constant dense<0.000000e+00> : vector<16x128xf32>
    %23 = tpu.matmul %21, %22, %cst {dimension_numbers = #tpu.dot_dimension_numbers<[1], [0], [0], [1], [0, 0, 1, 1], [], []>} : vector<16x32xbf16>, vector<32x128xbf16>, vector<16x128xf32> -> vector<16x128xf32>
    %c0_11 = arith.constant 0 : index
    %c0_12 = arith.constant 0 : index
    %24 = vector.load %arg6[%c0_11, %c0_12] : memref<1x128xf32, #tpu.memory_space<vmem>>, vector<1x128xf32>
    %25 = vector.broadcast %10 : vector<16x1xf32> to vector<16x128xf32>
    %26 = vector.broadcast %24 : vector<1x128xf32> to vector<16x128xf32>
    %27 = arith.mulf %25, %26 : vector<16x128xf32>
    %28 = arith.addf %23, %27 : vector<16x128xf32>
    %cst_13 = arith.constant 0.000000e+00 : f32
    %29 = vector.broadcast %cst_13 : f32 to vector<16x128xf32>
    %30 = arith.maximumf %28, %29 : vector<16x128xf32>
    %31 = tpu.iota {dimensions = array<i32: 0>} : vector<16x16xi32>
    %32 = vector.broadcast %8 : vector<1x16xi32> to vector<16x16xi32>
    %33 = arith.cmpi eq, %31, %32 : vector<16x16xi32>
    %34 = arith.extui %33 : vector<16x16xi1> to vector<16x16xi32>
    %35 = arith.sitofp %34 : vector<16x16xi32> to vector<16x16xf32>
    %36 = arith.truncf %35 : vector<16x16xf32> to vector<16x16xbf16>
    %c0_14 = arith.constant 0 : index
    %c0_15 = arith.constant 0 : index
    %37 = vector.load %arg11[%c0_14, %c0_15] : memref<16x128xf32, #tpu.memory_space<vmem>>, vector<16x128xf32>
    %38 = arith.truncf %30 : vector<16x128xf32> to vector<16x128xbf16>
    %cst_16 = arith.constant dense<0.000000e+00> : vector<16x128xf32>
    %39 = tpu.matmul %36, %38, %cst_16 {dimension_numbers = #tpu.dot_dimension_numbers<[1], [0], [0], [1], [0, 0, 1, 1], [], []>} : vector<16x16xbf16>, vector<16x128xbf16>, vector<16x128xf32> -> vector<16x128xf32>
    %40 = arith.addf %37, %39 : vector<16x128xf32>
    %c0_17 = arith.constant 0 : index
    %c0_18 = arith.constant 0 : index
    %41 = vector.load %arg11[%c0_17, %c0_18] : memref<16x128xf32, #tpu.memory_space<vmem>>, vector<16x128xf32>
    tpu.vector_store %arg11[%c0_17, %c0_18], %40 {strides = array<i32>} : memref<16x128xf32, #tpu.memory_space<vmem>>, vector<16x128xf32>,
    %c1_i32 = arith.constant 1 : i32
    %42 = arith.cmpi eq, %arg0, %c1_i32 : i32
    %43 = arith.extui %42 : i1 to i32
    %c0_i32_19 = arith.constant 0 : i32
    %44 = arith.cmpi ne, %43, %c0_i32_19 : i32
    scf.if %44 {
      %c0_20 = arith.constant 0 : index
      %c0_21 = arith.constant 0 : index
      %45 = vector.load %arg4[%c0_20, %c0_21] : memref<16x5xf32, #tpu.memory_space<vmem>>, vector<16x5xf32>
      %c0_22 = arith.constant 0 : index
      %c0_23 = arith.constant 0 : index
      %46 = vector.load %arg8[%c0_22, %c0_23] : memref<5x256xf32, #tpu.memory_space<vmem>>, vector<5x256xf32>
      %cst_24 = arith.constant dense<0.000000e+00> : vector<16x256xf32>
      %47 = tpu.matmul %45, %46, %cst_24 {dimension_numbers = #tpu.dot_dimension_numbers<[1], [0], [0], [1], [0, 0, 1, 1], [], []>} : vector<16x5xf32>, vector<5x256xf32>, vector<16x256xf32> -> vector<16x256xf32>
      %48 = vector.extract_strided_slice %47 {offsets = [0, 0], sizes = [16, 128], strides = [1, 1]} : vector<16x256xf32> to vector<16x128xf32>
      %c0_25 = arith.constant 0 : index
      %c0_26 = arith.constant 0 : index
      %49 = vector.load %arg11[%c0_25, %c0_26] : memref<16x128xf32, #tpu.memory_space<vmem>>, vector<16x128xf32>
      %c0_27 = arith.constant 0 : index
      %c0_28 = arith.constant 0 : index
      %50 = vector.load %arg7[%c0_27, %c0_28] : memref<128x128xf32, #tpu.memory_space<vmem>>, vector<128x128xf32>
      %cst_29 = arith.constant dense<0.000000e+00> : vector<16x128xf32>
      %51 = tpu.matmul %49, %50, %cst_29 {dimension_numbers = #tpu.dot_dimension_numbers<[1], [0], [0], [1], [0, 0, 1, 1], [], []>} : vector<16x128xf32>, vector<128x128xf32>, vector<16x128xf32> -> vector<16x128xf32>
      %52 = arith.addf %48, %51 : vector<16x128xf32>
      %53 = vector.extract_strided_slice %47 {offsets = [0, 128], sizes = [16, 128], strides = [1, 1]} : vector<16x256xf32> to vector<16x128xf32>
      %cst_30 = arith.constant 0.000000e+00 : f32
      %54 = vector.broadcast %cst_30 : f32 to vector<16x128xf32>
      %55 = arith.maximumf %52, %54 : vector<16x128xf32>
      %56 = arith.addf %53, %55 : vector<16x128xf32>
      %c0_31 = arith.constant 0 : index
      %c0_32 = arith.constant 0 : index
      %57 = vector.load %arg9[%c0_31, %c0_32] : memref<16x128xf32, #tpu.memory_space<vmem>>, vector<16x128xf32>
      tpu.vector_store %arg9[%c0_31, %c0_32], %56 {strides = array<i32>} : memref<16x128xf32, #tpu.memory_space<vmem>>, vector<16x128xf32>,
    } else {
    }
    return
  }
  func.func @transform_0(%arg0: i32) -> (i32, i32, i32) {
    %c0_i32 = arith.constant 0 : i32
    %c0_i32_0 = arith.constant 0 : i32
    %c0_i32_1 = arith.constant 0 : i32
    return %arg0, %c0_i32, %c0_i32_0 : i32, i32, i32
  }
  func.func @transform_1(%arg0: i32) -> (i32, i32, i32) {
    %c0_i32 = arith.constant 0 : i32
    %c0_i32_0 = arith.constant 0 : i32
    %c0_i32_1 = arith.constant 0 : i32
    return %arg0, %c0_i32, %c0_i32_0 : i32, i32, i32
  }
  func.func @transform_2(%arg0: i32) -> (i32, i32, i32) {
    %c0_i32 = arith.constant 0 : i32
    %c0_i32_0 = arith.constant 0 : i32
    %c0_i32_1 = arith.constant 0 : i32
    return %arg0, %c0_i32, %c0_i32_0 : i32, i32, i32
  }
  func.func @transform_3(%arg0: i32) -> (i32, i32) {
    %c0_i32 = arith.constant 0 : i32
    %c0_i32_0 = arith.constant 0 : i32
    %c0_i32_1 = arith.constant 0 : i32
    return %c0_i32, %c0_i32_0 : i32, i32
  }
  func.func @transform_4(%arg0: i32) -> (i32, i32) {
    %c0_i32 = arith.constant 0 : i32
    %c0_i32_0 = arith.constant 0 : i32
    %c0_i32_1 = arith.constant 0 : i32
    return %c0_i32, %c0_i32_0 : i32, i32
  }
  func.func @transform_5(%arg0: i32) -> (i32, i32) {
    %c0_i32 = arith.constant 0 : i32
    %c0_i32_0 = arith.constant 0 : i32
    %c0_i32_1 = arith.constant 0 : i32
    return %c0_i32, %c0_i32_0 : i32, i32
  }
  func.func @transform_6(%arg0: i32) -> (i32, i32) {
    %c0_i32 = arith.constant 0 : i32
    %c0_i32_0 = arith.constant 0 : i32
    %c0_i32_1 = arith.constant 0 : i32
    return %c0_i32, %c0_i32_0 : i32, i32
  }
  func.func @transform_7(%arg0: i32) -> (i32, i32) {
    %c0_i32 = arith.constant 0 : i32
    %c0_i32_0 = arith.constant 0 : i32
    %c0_i32_1 = arith.constant 0 : i32
    return %c0_i32, %c0_i32_0 : i32, i32
  }
  func.func @transform_8(%arg0: i32) -> (i32, i32) {
    %c0_i32 = arith.constant 0 : i32
    %c0_i32_0 = arith.constant 0 : i32
    %c0_i32_1 = arith.constant 0 : i32
    return %c0_i32, %c0_i32_0 : i32, i32
  }
}

</mosaic_0001>

<llo_original>
// kernel: tpu_custom_call.1
$region0: #{tpu_custom_call.1}
  #allocation0 [shape = 'u32[]', space=smem, size = 0x4, offset = 0x4, fixed_abs, tag = 'smem constant byte address 0x4 - core index']
  #allocation1 [shape = 'u32[144,128]{1,0:T(1,128)}', space=vmem, size = 0x12000, scoped, tag = 'internal scratch']
  #allocation2 [shape = 'bf16[32,128]{1,0:T(8,128)(2,1)}', space=vmem, size = 0x2000, scoped, tag = 'scratch operand']
  #allocation3 [shape = 'f32[16,128]{1,0:T(8,128)}', space=vmem, size = 0x2000, scoped, tag = 'scratch operand']
  %s0 = inlined_call_operand.vmem [shape: s32[2,16,2], index: 0, kind: input, shape index: {}]
  %s1 = inlined_call_operand.vmem [shape: s32[2,1,16], index: 1, kind: input, shape index: {}]
  %s2 = inlined_call_operand.vmem [shape: f32[2,16,1], index: 2, kind: input, shape index: {}]
  %s3 = inlined_call_operand.vmem [shape: f32[16,5], index: 3, kind: input, shape index: {}]
  %s4 = inlined_call_operand.vmem [shape: f32[5,256], index: 4, kind: input, shape index: {}]
  %s5 = inlined_call_operand.vmem [shape: f32[1,128], index: 5, kind: input, shape index: {}]
  %s6 = inlined_call_operand.hbm [shape: f32[128,128], index: 6, kind: input, shape index: {}]
  %s7 = inlined_call_operand.vmem [shape: f32[5,256], index: 7, kind: input, shape index: {}]
  %s8 = inlined_call_operand.hbm [shape: f32[16,128], index: 8, kind: output, shape index: {}]
  %s9 = sld [smem:[#allocation0]]
  $region77: #{tpu_custom_call.1} parent=0
    _
  %s11 = ssub.s32 1, %s9
  %s12 = scalar_select 0, %s11, %s9
  $region1: #{tpu_custom_call.1} parent=0
    #allocation4 [shape = 'u8[65536]{0}', space=vmem, size = 0x10000, scoped, tag = 'input window, operand 6, single buffered']
    #allocation5 [shape = 's32[2]{0}', space=sflag, size = 0x8, scoped, tag = 'scoped memory for tpu_custom_call.1']
    #allocation6 [shape = 's32[2]{0}', space=sflag, size = 0x8, scoped, tag = 'scoped memory for tpu_custom_call.1']
    #allocation7 [shape = 'u8[8192]{0}', space=vmem, size = 0x2000, scoped, tag = 'output window, operand 0, single buffered']
    %13 = vsyncpa [#allocation5], 0
    %14 = vsyncpa [#allocation6], 0
    loop: start=0, step=1, limit=4
    $region2: #{tpu_custom_call.1} parent=1 // loop_pre_header
      _
    $region3: #{tpu_custom_call.1} parent=1 // loop_header
      %s16 = sphi 0, %s20
      %p17 = scmp.ge.s32.totalorder %s16, 4
      %s26 = sphi 0, %s28
      %s29 = sphi 0, %s26
      %s30 = sphi 0, %s29
      %s46 = sphi 0, %s30
      %s52 = sphi 0, %s54
      %s55 = sphi 0, %s52
      %s56 = sphi 0, %s55
      %s72 = sphi 0, %s56
      %s78 = sphi 0, %s80
      %s81 = sphi 0, %s78
      %s82 = sphi 0, %s81
      %s98 = sphi 0, %s82
      %s102 = sphi 0, %s102
      %s104 = sphi 0, %s102
      %s105 = sphi 0, %s104
      %s119 = sphi 0, %s105
      %s123 = sphi 0, %s123
      %s125 = sphi 0, %s123
      %s126 = sphi 0, %s125
      %s140 = sphi 0, %s126
      %s144 = sphi 0, %s144
      %s146 = sphi 0, %s144
      %s147 = sphi 0, %s146
      %s161 = sphi 0, %s147
      %s165 = sphi 0, %s165
      %s167 = sphi 0, %s165
      %s168 = sphi 0, %s167
      %s182 = sphi 0, %s168
      %s186 = sphi 0, %s186
      %s188 = sphi 0, %s186
      %s189 = sphi 0, %s188
      %s203 = sphi 0, %s189
      %s207 = sphi 0, %s207
      %s209 = sphi 0, %s207
      %s210 = sphi 0, %s209
      %s224 = sphi 0, %s210
    $region4: #{tpu_custom_call.1} parent=1 // loop_header_branch
      %19 = sbr.rel (%p17) target = $region8
    $region5: #{tpu_custom_call.1} parent=1 // loop_body
      %s21 = ssub.s32 %s16, 1
      %s22 = ssub.s32 %s16, 2
      %s23 = sadd.s32 %s16, 1
      %s24 = ssub.s32 %s16, %s23
      %p25 = scmp.eq.s32.totalorder %s24, 0
      %s27 = sadd.s32 %s26, 1
      %s28 = scalar_select %p25, %s26, %s27
      %p31 = pneg %p25
      %p32 = scmp.eq.s32.totalorder %s16, 1
      %p33 = por %p31, %p32
      %p34 = scmp.ne.s32.totalorder %s26, %s29
      %p35 = scmp.eq.s32.totalorder %s16, 0
      %p36 = por %p34, %p35
      %p37 = scmp.ne.s32.totalorder %s26, %s29
      %p38 = scmp.eq.s32.totalorder %s21, 1
      %p39 = por %p37, %p38
      %p40 = scmp.ne.s32.totalorder %s29, %s30
      %p41 = scmp.eq.s32.totalorder %s21, 0
      %p42 = por %p40, %p41
      %p43 = scmp.ne.s32.totalorder %s29, %s30
      %p44 = scmp.eq.s32.totalorder %s22, 1
      %p45 = por %p43, %p44
      %p47 = scmp.ne.s32.totalorder %s30, %s46
      %p48 = scmp.eq.s32.totalorder %s22, 0
      %p49 = por %p47, %p48
      %s50 = ssub.s32 %s16, %s23
      %p51 = scmp.eq.s32.totalorder %s50, 0
      %s53 = sadd.s32 %s52, 1
      %s54 = scalar_select %p51, %s52, %s53
      %p57 = pneg %p51
      %p58 = scmp.eq.s32.totalorder %s16, 1
      %p59 = por %p57, %p58
      %p60 = scmp.ne.s32.totalorder %s52, %s55
      %p61 = scmp.eq.s32.totalorder %s16, 0
      %p62 = por %p60, %p61
      %p63 = scmp.ne.s32.totalorder %s52, %s55
      %p64 = scmp.eq.s32.totalorder %s21, 1
      %p65 = por %p63, %p64
      %p66 = scmp.ne.s32.totalorder %s55, %s56
      %p67 = scmp.eq.s32.totalorder %s21, 0
      %p68 = por %p66, %p67
      %p69 = scmp.ne.s32.totalorder %s55, %s56
      %p70 = scmp.eq.s32.totalorder %s22, 1
      %p71 = por %p69, %p70
      %p73 = scmp.ne.s32.totalorder %s56, %s72
      %p74 = scmp.eq.s32.totalorder %s22, 0
      %p75 = por %p73, %p74
      %s76 = ssub.s32 %s16, %s23
      %p77 = scmp.eq.s32.totalorder %s76, 0
      %s79 = sadd.s32 %s78, 1
      %s80 = scalar_select %p77, %s78, %s79
      %p83 = pneg %p77
      %p84 = scmp.eq.s32.totalorder %s16, 1
      %p85 = por %p83, %p84
      %p86 = scmp.ne.s32.totalorder %s78, %s81
      %p87 = scmp.eq.s32.totalorder %s16, 0
      %p88 = por %p86, %p87
      %p89 = scmp.ne.s32.totalorder %s78, %s81
      %p90 = scmp.eq.s32.totalorder %s21, 1
      %p91 = por %p89, %p90
      %p92 = scmp.ne.s32.totalorder %s81, %s82
      %p93 = scmp.eq.s32.totalorder %s21, 0
      %p94 = por %p92, %p93
      %p95 = scmp.ne.s32.totalorder %s81, %s82
      %p96 = scmp.eq.s32.totalorder %s22, 1
      %p97 = por %p95, %p96
      %p99 = scmp.ne.s32.totalorder %s82, %s98
      %p100 = scmp.eq.s32.totalorder %s22, 0
      %p101 = por %p99, %p100
      %s103 = sadd.s32 %s102, 1
      %p106 = scmp.eq.s32.totalorder %s16, 1
      %p107 = scmp.ne.s32.totalorder %s102, %s104
      %p108 = scmp.eq.s32.totalorder %s16, 0
      %p109 = por %p107, %p108
      %p110 = scmp.ne.s32.totalorder %s102, %s104
      %p111 = scmp.eq.s32.totalorder %s21, 1
      %p112 = por %p110, %p111
      %p113 = scmp.ne.s32.totalorder %s104, %s105
      %p114 = scmp.eq.s32.totalorder %s21, 0
      %p115 = por %p113, %p114
      %p116 = scmp.ne.s32.totalorder %s104, %s105
      %p117 = scmp.eq.s32.totalorder %s22, 1
      %p118 = por %p116, %p117
      %p120 = scmp.ne.s32.totalorder %s105, %s119
      %p121 = scmp.eq.s32.totalorder %s22, 0
      %p122 = por %p120, %p121
      %s124 = sadd.s32 %s123, 1
      %p127 = scmp.eq.s32.totalorder %s16, 1
      %p128 = scmp.ne.s32.totalorder %s123, %s125
      %p129 = scmp.eq.s32.totalorder %s16, 0
      %p130 = por %p128, %p129
      %p131 = scmp.ne.s32.totalorder %s123, %s125
      %p132 = scmp.eq.s32.totalorder %s21, 1
      %p133 = por %p131, %p132
      %p134 = scmp.ne.s32.totalorder %s125, %s126
      %p135 = scmp.eq.s32.totalorder %s21, 0
      %p136 = por %p134, %p135
      %p137 = scmp.ne.s32.totalorder %s125, %s126
      %p138 = scmp.eq.s32.totalorder %s22, 1
      %p139 = por %p137, %p138
      %p141 = scmp.ne.s32.totalorder %s126, %s140
      %p142 = scmp.eq.s32.totalorder %s22, 0
      %p143 = por %p141, %p142
      %s145 = sadd.s32 %s144, 1
      %p148 = scmp.eq.s32.totalorder %s16, 1
      %p149 = scmp.ne.s32.totalorder %s144, %s146
      %p150 = scmp.eq.s32.totalorder %s16, 0
      %p151 = por %p149, %p150
      %p152 = scmp.ne.s32.totalorder %s144, %s146
      %p153 = scmp.eq.s32.totalorder %s21, 1
      %p154 = por %p152, %p153
      %p155 = scmp.ne.s32.totalorder %s146, %s147
      %p156 = scmp.eq.s32.totalorder %s21, 0
      %p157 = por %p155, %p156
      %p158 = scmp.ne.s32.totalorder %s146, %s147
      %p159 = scmp.eq.s32.totalorder %s22, 1
      %p160 = por %p158, %p159
      %p162 = scmp.ne.s32.totalorder %s147, %s161
      %p163 = scmp.eq.s32.totalorder %s22, 0
      %p164 = por %p162, %p163
      %s166 = sadd.s32 %s165, 1
      %p169 = scmp.eq.s32.totalorder %s16, 1
      %p170 = scmp.ne.s32.totalorder %s165, %s167
      %p171 = scmp.eq.s32.totalorder %s16, 0
      %p172 = por %p170, %p171
      %p173 = scmp.ne.s32.totalorder %s165, %s167
      %p174 = scmp.eq.s32.totalorder %s21, 1
      %p175 = por %p173, %p174
      %p176 = scmp.ne.s32.totalorder %s167, %s168
      %p177 = scmp.eq.s32.totalorder %s21, 0
      %p178 = por %p176, %p177
      %p179 = scmp.ne.s32.totalorder %s167, %s168
      %p180 = scmp.eq.s32.totalorder %s22, 1
      %p181 = por %p179, %p180
      %p183 = scmp.ne.s32.totalorder %s168, %s182
      %p184 = scmp.eq.s32.totalorder %s22, 0
      %p185 = por %p183, %p184
      %s187 = sadd.s32 %s186, 1
      %p190 = scmp.eq.s32.totalorder %s16, 1
      %p191 = scmp.ne.s32.totalorder %s186, %s188
      %p192 = scmp.eq.s32.totalorder %s16, 0
      %p193 = por %p191, %p192
      %p194 = scmp.ne.s32.totalorder %s186, %s188
      %p195 = scmp.eq.s32.totalorder %s21, 1
      %p196 = por %p194, %p195
      %p197 = scmp.ne.s32.totalorder %s188, %s189
      %p198 = scmp.eq.s32.totalorder %s21, 0
      %p199 = por %p197, %p198
      %p200 = scmp.ne.s32.totalorder %s188, %s189
      %p201 = scmp.eq.s32.totalorder %s22, 1
      %p202 = por %p200, %p201
      %p204 = scmp.ne.s32.totalorder %s189, %s203
      %p205 = scmp.eq.s32.totalorder %s22, 0
      %p206 = por %p204, %p205
      %s208 = sadd.s32 %s207, 1
      %p211 = scmp.eq.s32.totalorder %s16, 1
      %p212 = scmp.ne.s32.totalorder %s207, %s209
      %p213 = scmp.eq.s32.totalorder %s16, 0
      %p214 = por %p212, %p213
      %p215 = scmp.ne.s32.totalorder %s207, %s209
      %p216 = scmp.eq.s32.totalorder %s21, 1
      %p217 = por %p215, %p216
      %p218 = scmp.ne.s32.totalorder %s209, %s210
      %p219 = scmp.eq.s32.totalorder %s21, 0
      %p220 = por %p218, %p219
      %p221 = scmp.ne.s32.totalorder %s209, %s210
      %p222 = scmp.eq.s32.totalorder %s22, 1
      %p223 = por %p221, %p222
      %p225 = scmp.ne.s32.totalorder %s210, %s224
      %p226 = scmp.eq.s32.totalorder %s22, 0
      %p227 = por %p225, %p226
      %p228 = scmp.le.s32.totalorder 1, %s16
      %p229 = scmp.lt.s32.totalorder %s16, 3
      %p230 = pnand %p228, %p229
      %p231 = pneg %p230
      // Predicated region
      $region9: #{tpu_custom_call.1} parent=5 // pred_check
        _
      $region10: #{tpu_custom_call.1} parent=5 // pred_check_branch
        %233 = sbr.rel (%p230) target = $region12
      $region11: #{tpu_custom_call.1} parent=5 // pred_region
        %s234 = ssub.s32 %s16, 1
        // Predicated region
        $region13: #{tpu_custom_call.1} parent=11 // pred_check
          %p235 = pneg %p115
        $region14: #{tpu_custom_call.1} parent=11 // pred_check_branch
          %237 = sbr.rel (%p235) target = $region16
        $region15: #{tpu_custom_call.1} parent=11 // pred_region
          _
        $region16: #{tpu_custom_call.1} parent=11 // pred_fallthru
          _
        // Predicated region
        $region17: #{tpu_custom_call.1} parent=11 // pred_check
          %p238 = pneg %p136
        $region18: #{tpu_custom_call.1} parent=11 // pred_check_branch
          %240 = sbr.rel (%p238) target = $region20
        $region19: #{tpu_custom_call.1} parent=11 // pred_region
          _
        $region20: #{tpu_custom_call.1} parent=11 // pred_fallthru
          _
        // Predicated region
        $region21: #{tpu_custom_call.1} parent=11 // pred_check
          %p241 = pneg %p157
        $region22: #{tpu_custom_call.1} parent=11 // pred_check_branch
          %243 = sbr.rel (%p241) target = $region24
        $region23: #{tpu_custom_call.1} parent=11 // pred_region
          _
        $region24: #{tpu_custom_call.1} parent=11 // pred_fallthru
          _
        // Predicated region
        $region25: #{tpu_custom_call.1} parent=11 // pred_check
          %p244 = pneg %p178
        $region26: #{tpu_custom_call.1} parent=11 // pred_check_branch
          %246 = sbr.rel (%p244) target = $region28
        $region27: #{tpu_custom_call.1} parent=11 // pred_region
          %s248 = ssub.s32 2048, 2048
          %249 = vsyncadd [#allocation5], %s248
          %s250 = sshll.u32 [#allocation4], 4
          %s251 = int_to_ptr.vmem [resolvable:$true] %s250
          %256 = dma.hbm_to_vmem [thread:$0]  %s6, 2048, %s251, [#allocation5], 128, 128, 8
        $region28: #{tpu_custom_call.1} parent=11 // pred_fallthru
          _
        // Predicated region
        $region29: #{tpu_custom_call.1} parent=11 // pred_check
          %p257 = pneg %p199
        $region30: #{tpu_custom_call.1} parent=11 // pred_check_branch
          %259 = sbr.rel (%p257) target = $region32
        $region31: #{tpu_custom_call.1} parent=11 // pred_region
          _
        $region32: #{tpu_custom_call.1} parent=11 // pred_fallthru
          _
      $region12: #{tpu_custom_call.1} parent=5 // pred_fallthru
        _
      %p260 = scmp.lt.s32.totalorder %s16, 2
      // Predicated region
      $region33: #{tpu_custom_call.1} parent=5 // pred_check
        %p261 = pneg %p260
      $region34: #{tpu_custom_call.1} parent=5 // pred_check_branch
        %263 = sbr.rel (%p261) target = $region36
      $region35: #{tpu_custom_call.1} parent=5 // pred_region
        // Predicated region
        $region37: #{tpu_custom_call.1} parent=35 // pred_check
          %p264 = pneg %p36
        $region38: #{tpu_custom_call.1} parent=35 // pred_check_branch
          %266 = sbr.rel (%p264) target = $region40
        $region39: #{tpu_custom_call.1} parent=35 // pred_region
          %p267 = scmp.lt.s32.totalorder %s16, 1
          %s268 = scalar_select %p267, %s16, 1
          %s269 = smul.addr %s268, 2
          %s270 = smul.addr %s269, 8
          %s271 = scalar_lea.vmem %s0, %s270
        $region40: #{tpu_custom_call.1} parent=35 // pred_fallthru
          _
        // Predicated region
        $region41: #{tpu_custom_call.1} parent=35 // pred_check
          %p272 = pneg %p62
        $region42: #{tpu_custom_call.1} parent=35 // pred_check_branch
          %274 = sbr.rel (%p272) target = $region44
        $region43: #{tpu_custom_call.1} parent=35 // pred_region
          %p275 = scmp.lt.s32.totalorder %s16, 1
          %s276 = scalar_select %p275, %s16, 1
          %s277 = scalar_lea.vmem %s1, %s276
        $region44: #{tpu_custom_call.1} parent=35 // pred_fallthru
          _
        // Predicated region
        $region45: #{tpu_custom_call.1} parent=35 // pred_check
          %p278 = pneg %p88
        $region46: #{tpu_custom_call.1} parent=35 // pred_check_branch
          %280 = sbr.rel (%p278) target = $region48
        $region47: #{tpu_custom_call.1} parent=35 // pred_region
          %p281 = scmp.lt.s32.totalorder %s16, 1
          %s282 = scalar_select %p281, %s16, 1
          %s283 = smul.addr %s282, 2
          %s284 = smul.addr %s283, 8
          %s285 = scalar_lea.vmem %s2, %s284
        $region48: #{tpu_custom_call.1} parent=35 // pred_fallthru
          _
      $region36: #{tpu_custom_call.1} parent=5 // pred_fallthru
        _
      %p286 = scmp.le.s32.totalorder 1, %s16
      %p287 = scmp.lt.s32.totalorder %s16, 3
      %p288 = pnand %p286, %p287
      %p289 = pneg %p288
      // Predicated region
      $region49: #{tpu_custom_call.1} parent=5 // pred_check
        _
      $region50: #{tpu_custom_call.1} parent=5 // pred_check_branch
        %291 = sbr.rel (%p288) target = $region52
      $region51: #{tpu_custom_call.1} parent=5 // pred_region
        %s292 = ssub.s32 %s16, 1
        // Predicated region
        $region53: #{tpu_custom_call.1} parent=51 // pred_check
          %p293 = pneg %p178
        $region54: #{tpu_custom_call.1} parent=51 // pred_check_branch
          %295 = sbr.rel (%p293) target = $region56
        $region55: #{tpu_custom_call.1} parent=51 // pred_region
          %296 = dma.done [#allocation5], 2048
        $region56: #{tpu_custom_call.1} parent=51 // pred_fallthru
          _
        %p297 = scmp.lt.s32.totalorder %s21, 1
        %s298 = scalar_select %p297, %s21, 1
        %s299 = smul.addr %s298, 2
        %s300 = smul.addr %s299, 8
        %s301 = scalar_lea.vmem %s0, %s300
        %p302 = pneg %p42
        %p303 = pneg %p39
        %p304 = scmp.lt.s32.totalorder %s21, 1
        %s305 = scalar_select %p304, %s21, 1
        %s306 = scalar_lea.vmem %s1, %s305
        %p307 = pneg %p68
        %p308 = pneg %p65
        %p309 = scmp.lt.s32.totalorder %s21, 1
        %s310 = scalar_select %p309, %s21, 1
        %s311 = smul.addr %s310, 2
        %s312 = smul.addr %s311, 8
        %s313 = scalar_lea.vmem %s2, %s312
        %p314 = pneg %p94
        %p315 = pneg %p91
        %p316 = pneg %p115
        %p317 = pneg %p112
        %p318 = pneg %p136
        %p319 = pneg %p133
        %p320 = pneg %p157
        %p321 = pneg %p154
        %p322 = pneg %p178
        %p323 = pneg %p175
        %p324 = pneg %p199
        %p325 = pneg %p196
        %p326 = pneg %p220
        %p327 = pneg %p217
        %p328 = scmp.lt.s32.totalorder %s21, 1
        %s329 = scalar_select %p328, %s21, 1
        %s330 = smul.addr %s329, 2
        %s331 = smul.addr %s330, 8
        %s332 = scalar_lea.vmem %s0, %s331
        %p333 = scmp.lt.s32.totalorder %s21, 1
        %s334 = scalar_select %p333, %s21, 1
        %s335 = scalar_lea.vmem %s1, %s334
        %p336 = scmp.lt.s32.totalorder %s21, 1
        %s337 = scalar_select %p336, %s21, 1
        %s338 = smul.addr %s337, 2
        %s339 = smul.addr %s338, 8
        %s340 = scalar_lea.vmem %s2, %s339
        %p342 = scmp.eq.s32.totalorder %s21, 0
        // Predicated region
        $region57: #{tpu_custom_call.1} parent=51 // pred_check
          %p343 = pneg %p342
        $region58: #{tpu_custom_call.1} parent=51 // pred_check_branch
          %345 = sbr.rel (%p343) target = $region60
        $region59: #{tpu_custom_call.1} parent=51 // pred_region
          %v346 = vld [vmem:[%s3] sm:$0xff]
          %v347 = vld [vmem:[%s3 + $0x8] sm:$0xff]
          %v348 = vld [vmem:[%s4] sm:$0x1f]
          %v349 = vld [vmem:[%s4 + $0x8] sm:$0x1f]
          %vm350 = vcmask 39936
          %v352 = vsel %vm350, %v346, 0
          %v355 = vsel %vm350, %v347, 0
          %vm357 = vcmask 1044480
          %v359 = vsel %vm357, %v348, 0
          %v362 = vsel %vm357, %v349, 0
          %364 = vmatprep.subr.mxu0 0.0
          %365 = vmatpush1.msra.mxu0 0.0
          %366 = vmatprep.subr.mxu0 0.0
          %367 = vmatpush1.msra.mxu0 0.0
          %368 = vmatprep.subr.mxu0 0.0
          %369 = vmatpush1.msra.mxu0 0.0
          %370 = vmatprep.subr.mxu0 0.0
          %371 = vmatpush1.msra.mxu0 0.0
          %372 = vmatprep.subr.mxu0 0.0
          %373 = vmatpush1.msra.mxu0 0.0
          %374 = vmatprep.subr.mxu0 0.0
          %375 = vmatpush1.msra.mxu0 0.0
          %376 = vmatprep.subr.mxu0 0.0
          %377 = vmatpush1.msra.mxu0 0.0
          %378 = vmatprep.subr.mxu0 0.0
          %379 = vmatpush1.msra.mxu0 0.0
          %380 = vmatprep.subr.mxu0 0.0
          %381 = vmatpush1.msra.mxu0 0.0
          %382 = vmatprep.subr.mxu0 0.0
          %383 = vmatpush1.msra.mxu0 0.0
          %384 = vmatprep.subr.mxu0 0.0
          %385 = vmatpush1.msra.mxu0 0.0
          %386 = vmatprep.subr.mxu0 0.0
          %387 = vmatpush1.msra.mxu0 0.0
          %388 = vmatprep.subr.mxu0 0.0
          %389 = vmatpush1.msra.mxu0 0.0
          %390 = vmatprep.subr.mxu0 0.0
          %391 = vmatpush1.msra.mxu0 0.0
          %392 = vmatprep.subr.mxu0 0.0
          %393 = vmatpush1.msra.mxu0 0.0
          %394 = vmatprep.subr.mxu0 %v362
          %395 = vmatpush1.msra.mxu0 %v359
          %396 = vmatprep.subr.mxu0 0.0
          %397 = vmatpush2.msra.mxu0 0.0
          %398 = vmatprep.subr.mxu0 0.0
          %399 = vmatpush2.msra.mxu0 0.0
          %400 = vmatprep.subr.mxu0 0.0
          %401 = vmatpush2.msra.mxu0 0.0
          %402 = vmatprep.subr.mxu0 0.0
          %403 = vmatpush2.msra.mxu0 0.0
          %404 = vmatprep.subr.mxu0 0.0
          %405 = vmatpush2.msra.mxu0 0.0
          %406 = vmatprep.subr.mxu0 0.0
          %407 = vmatpush2.msra.mxu0 0.0
          %408 = vmatprep.subr.mxu0 0.0
          %409 = vmatpush2.msra.mxu0 0.0
          %410 = vmatprep.subr.mxu0 0.0
          %411 = vmatpush2.msra.mxu0 0.0
          %412 = vmatprep.subr.mxu0 0.0
          %413 = vmatpush2.msra.mxu0 0.0
          %414 = vmatprep.subr.mxu0 0.0
          %415 = vmatpush2.msra.mxu0 0.0
          %416 = vmatprep.subr.mxu0 0.0
          %417 = vmatpush2.msra.mxu0 0.0
          %418 = vmatprep.subr.mxu0 0.0
          %419 = vmatpush2.msra.mxu0 0.0
          %420 = vmatprep.subr.mxu0 0.0
          %421 = vmatpush2.msra.mxu0 0.0
          %422 = vmatprep.subr.mxu0 0.0
          %423 = vmatpush2.msra.mxu0 0.0
          %424 = vmatprep.subr.mxu0 0.0
          %425 = vmatpush2.msra.mxu0 0.0
          %426 = vmatprep.subr.mxu0 0.0
          %427 = vmatpush2.msra.mxu0 0.0
          %428 = vmatprep.mubr.f32.mxu0 0.0
          %429 = vmatmul.mubr.f32.gmra.mxu0 %v352
          %v430 = vpop.f32.mrf.mxu0
          %v431 = vadd.f32 0.0, %v430
          %v432 = vpop.f32.mrf.mxu0
          %v433 = vadd.f32 0.0, %v432
          %434 = vmatprep.mubr.f32.mxu0 0.0
          %435 = vmatmul.mubr.f32.gmra.mxu0 %v355
          %v436 = vpop.f32.mrf.mxu0
          %v437 = vadd.f32 0.0, %v436
          %v438 = vpop.f32.mrf.mxu0
          %v439 = vadd.f32 0.0, %v438
          %440 = vdwg.mxu0
          %v441 = vpack.c.bf16 %v437, %v431
          %v443 = vunpack.c.l.b16 %v441
          %v444 = vunpack.c.h.b16 %v441
          %v445 = vpack.c.b16 %v443, %v443
          %v446 = vpack.c.b16 %v444, %v444
          %449 = vst [vmem:[#allocation2] sm:$0xf] %v445
          %450 = vst [vmem:[#allocation2 + $0x4] sm:$0xf] %v446
          %v451 = vpack.c.bf16 %v439, %v433
          %v453 = vunpack.c.l.b16 %v451
          %v454 = vunpack.c.h.b16 %v451
          %v455 = vpack.c.b16 %v453, %v453
          %v456 = vpack.c.b16 %v454, %v454
          %459 = vst [vmem:[#allocation2 + $0x8] sm:$0xf] %v455
          %460 = vst [vmem:[#allocation2 + $0xc] sm:$0xf] %v456
          %461 = vst [vmem:[#allocation3] sm:$0xff] 0.0
          %462 = vst [vmem:[#allocation3 + $0x8] sm:$0xff] 0.0
        $region60: #{tpu_custom_call.1} parent=51 // pred_fallthru
          _
        %v463 = vld [vmem:[%s332] sm:$0xff]
        %v464 = vld [vmem:[%s332 + $0x8] sm:$0xff]
        %v465 = vld [vmem:[%s335] sm:$0x1]
        %v466 = vld [vmem:[%s340] sm:$0xff]
        %v467 = vld [vmem:[%s340 + $0x8] sm:$0xff]
        %v468 = vlaneseq
        %v469 = vand.u32 %v468, 127
        %470 = vset.pattern.permute.xlu0 0
        %471 = vperm.xlu0 %470, %v463
        %v472 = vpop.permute.xlu0 %471
        %473 = vset.pattern.permute.xlu0 0
        %474 = vperm.xlu0 %473, %v464
        %v475 = vpop.permute.xlu0 %474
        %vm476 = vcmp.eq.s32.totalorder %v469, %v472
        %vm477 = vcmp.eq.s32.totalorder %v469, %v475
        %v478 = vadd.s32 %v463, 16
        %v479 = vadd.s32 %v464, 16
        %480 = vset.pattern.permute.xlu0 1
        %481 = vperm.xlu0 %480, %v478
        %v482 = vpop.permute.xlu0 %481
        %483 = vset.pattern.permute.xlu0 1
        %484 = vperm.xlu0 %483, %v479
        %v485 = vpop.permute.xlu0 %484
        %vm486 = vcmp.eq.s32.totalorder %v469, %v482
        %vm487 = vcmp.eq.s32.totalorder %v469, %v485
        %vm488 = vmor %vm476, %vm486
        %vm489 = vmor %vm477, %vm487
        %v490 = vsel %vm488, 1, 0
        %v491 = vsel %vm489, 1, 0
        %v492 = vcvt.s32.f32 %v490
        %v493 = vcvt.s32.f32 %v491
        %v494 = vpack.c.bf16 %v493, %v492
        %v495 = vld [vmem:[#allocation2] sm:$0xf]
        %v496 = vld [vmem:[#allocation2 + $0x4] sm:$0xf]
        %v497 = vld [vmem:[#allocation2 + $0x8] sm:$0xf]
        %v498 = vld [vmem:[#allocation2 + $0xc] sm:$0xf]
        %v499 = vld [vmem:[%s5] sm:$0x1]
        %501 = vset.pattern.permute.xlu0 0
        %502 = vperm.xlu0 %501, %v466
        %v503 = vpop.permute.xlu0 %502
        %506 = vset.pattern.permute.xlu0 0
        %507 = vperm.xlu0 %506, %v467
        %v508 = vpop.permute.xlu0 %507
        %v511 = vlaneseq
        %v512 = vshrl.u32 %v511, 7
        %v513 = vsub.s32 0, %v512
        %v514 = vrot.slane %v499, %v513
        %v516 = vmul.f32 %v503, %v514
        %v517 = vmul.f32 %v508, %v514
        %v522 = vunpack.c.l.b16 %v495
        %v523 = vunpack.c.l.b16 %v496
        %v524 = vunpack.c.l.b16 %v497
        %v525 = vunpack.c.l.b16 %v498
        %v526 = vpack.c.b16 %v523, %v522
        %v527 = vpack.c.b16 %v525, %v524
        %vm530 = vcmask 261120
        %v532 = vsel %vm530, %v494, 0
        %534 = vmatprep.subr.bf16.mxu0 0
        %535 = vmatpush1.bf16.msra.mxu0 0
        %536 = vmatprep.subr.bf16.mxu0 0
        %537 = vmatpush1.bf16.msra.mxu0 0
        %538 = vmatprep.subr.bf16.mxu0 0
        %539 = vmatpush1.bf16.msra.mxu0 0
        %540 = vmatprep.subr.bf16.mxu0 0
        %541 = vmatpush1.bf16.msra.mxu0 0
        %542 = vmatprep.subr.bf16.mxu0 0
        %543 = vmatpush1.bf16.msra.mxu0 0
        %544 = vmatprep.subr.bf16.mxu0 0
        %545 = vmatpush1.bf16.msra.mxu0 0
        %546 = vmatprep.subr.bf16.mxu0 0
        %547 = vmatpush1.bf16.msra.mxu0 %v527
        %548 = vmatprep.subr.bf16.mxu0 0
        %549 = vmatpush1.bf16.msra.mxu0 %v526
        %550 = vmatprep.subr.bf16.mxu0 0
        %551 = vmatpush2.bf16.msra.mxu0 0
        %552 = vmatprep.subr.bf16.mxu0 0
        %553 = vmatpush2.bf16.msra.mxu0 0
        %554 = vmatprep.subr.bf16.mxu0 0
        %555 = vmatpush2.bf16.msra.mxu0 0
        %556 = vmatprep.subr.bf16.mxu0 0
        %557 = vmatpush2.bf16.msra.mxu0 0
        %558 = vmatprep.subr.bf16.mxu0 0
        %559 = vmatpush2.bf16.msra.mxu0 0
        %560 = vmatprep.subr.bf16.mxu0 0
        %561 = vmatpush2.bf16.msra.mxu0 0
        %562 = vmatprep.subr.bf16.mxu0 0
        %563 = vmatpush2.bf16.msra.mxu0 0
        %564 = vmatprep.subr.bf16.mxu0 0
        %565 = vmatpush2.bf16.msra.mxu0 0
        %566 = vmatprep.mubr.bf16.mxu0 0
        %567 = vmatmul.mubr.bf16.gmra.mxu0 %v532
        %v568 = vpop.f32.mrf.mxu0
        %v569 = vadd.f32 %v516, %v568
        %v570 = vpop.f32.mrf.mxu0
        %v571 = vpop.f32.mrf.mxu0
        %v572 = vadd.f32 %v517, %v571
        %v573 = vpop.f32.mrf.mxu0
        %574 = vdwg.mxu0
        %v575 = vmax.f32 %v569, 0.0
        %v576 = vmax.f32 %v572, 0.0
        %v577 = vlaneseq
        %v578 = vshrl.u32 %v577, 7
        %v579 = vadd.s32 %v578, 8
        %v580 = vlaneseq
        %v581 = vshrl.u32 %v580, 7
        %v582 = vsub.s32 0, %v581
        %v583 = vrot.slane %v465, %v582
        %vm584 = vcmp.eq.s32.totalorder %v578, %v583
        %vm585 = vcmp.eq.s32.totalorder %v579, %v583
        %v586 = vsel %vm584, 1, 0
        %v587 = vsel %vm585, 1, 0
        %v588 = vcvt.s32.f32 %v586
        %v589 = vcvt.s32.f32 %v587
        %v590 = vpack.c.bf16 %v589, %v588
        %v591 = vld [vmem:[#allocation3] sm:$0xff]
        %v592 = vld [vmem:[#allocation3 + $0x8] sm:$0xff]
        %v593 = vpack.c.bf16 %v576, %v575
        %vm594 = vcmask 130048
        %v596 = vsel %vm594, %v590, 0
        %598 = vmatprep.subr.bf16.mxu0 0
        %599 = vmatpush1.bf16.msra.mxu0 0
        %600 = vmatprep.subr.bf16.mxu0 0
        %601 = vmatpush1.bf16.msra.mxu0 0
        %602 = vmatprep.subr.bf16.mxu0 0
        %603 = vmatpush1.bf16.msra.mxu0 0
        %604 = vmatprep.subr.bf16.mxu0 0
        %605 = vmatpush1.bf16.msra.mxu0 0
        %606 = vmatprep.subr.bf16.mxu0 0
        %607 = vmatpush1.bf16.msra.mxu0 0
        %608 = vmatprep.subr.bf16.mxu0 0
        %609 = vmatpush1.bf16.msra.mxu0 0
        %610 = vmatprep.subr.bf16.mxu0 0
        %611 = vmatpush1.bf16.msra.mxu0 0
        %612 = vmatprep.subr.bf16.mxu0 0
        %613 = vmatpush1.bf16.msra.mxu0 %v593
        %614 = vmatprep.subr.bf16.mxu0 0
        %615 = vmatpush2.bf16.msra.mxu0 0
        %616 = vmatprep.subr.bf16.mxu0 0
        %617 = vmatpush2.bf16.msra.mxu0 0
        %618 = vmatprep.subr.bf16.mxu0 0
        %619 = vmatpush2.bf16.msra.mxu0 0
        %620 = vmatprep.subr.bf16.mxu0 0
        %621 = vmatpush2.bf16.msra.mxu0 0
        %622 = vmatprep.subr.bf16.mxu0 0
        %623 = vmatpush2.bf16.msra.mxu0 0
        %624 = vmatprep.subr.bf16.mxu0 0
        %625 = vmatpush2.bf16.msra.mxu0 0
        %626 = vmatprep.subr.bf16.mxu0 0
        %627 = vmatpush2.bf16.msra.mxu0 0
        %628 = vmatprep.subr.bf16.mxu0 0
        %629 = vmatpush2.bf16.msra.mxu0 0
        %630 = vmatprep.mubr.bf16.mxu0 0
        %631 = vmatmul.mubr.bf16.gmra.mxu0 %v596
        %v632 = vpop.f32.mrf.mxu0
        %v633 = vadd.f32 0.0, %v632
        %v634 = vpop.f32.mrf.mxu0
        %v635 = vpop.f32.mrf.mxu0
        %v636 = vadd.f32 0.0, %v635
        %v637 = vpop.f32.mrf.mxu0
        %638 = vdwg.mxu0
        %v639 = vadd.f32 %v591, %v633
        %v640 = vadd.f32 %v592, %v636
        %641 = vst [vmem:[#allocation3] sm:$0xff] %v639
        %642 = vst [vmem:[#allocation3 + $0x8] sm:$0xff] %v640
        %p643 = scmp.eq.s32.totalorder %s21, 1
        // Predicated region
        $region61: #{tpu_custom_call.1} parent=51 // pred_check
          %p644 = pneg %p643
        $region62: #{tpu_custom_call.1} parent=51 // pred_check_branch
          %646 = sbr.rel (%p644) target = $region64
        $region63: #{tpu_custom_call.1} parent=51 // pred_region
          %v647 = vld [vmem:[%s3] sm:$0xff]
          %v648 = vld [vmem:[%s3 + $0x8] sm:$0xff]
          %v649 = vld [vmem:[%s7] sm:$0x1f]
          %v650 = vld [vmem:[%s7 + $0x8] sm:$0x1f]
          %vm651 = vcmask 39936
          %v653 = vsel %vm651, %v647, 0
          %v656 = vsel %vm651, %v648, 0
          %vm658 = vcmask 1044480
          %v660 = vsel %vm658, %v649, 0
          %v663 = vsel %vm658, %v650, 0
          %665 = vmatprep.subr.mxu0 0.0
          %666 = vmatpush1.msra.mxu0 0.0
          %667 = vmatprep.subr.mxu0 0.0
          %668 = vmatpush1.msra.mxu0 0.0
          %669 = vmatprep.subr.mxu0 0.0
          %670 = vmatpush1.msra.mxu0 0.0
          %671 = vmatprep.subr.mxu0 0.0
          %672 = vmatpush1.msra.mxu0 0.0
          %673 = vmatprep.subr.mxu0 0.0
          %674 = vmatpush1.msra.mxu0 0.0
          %675 = vmatprep.subr.mxu0 0.0
          %676 = vmatpush1.msra.mxu0 0.0
          %677 = vmatprep.subr.mxu0 0.0
          %678 = vmatpush1.msra.mxu0 0.0
          %679 = vmatprep.subr.mxu0 0.0
          %680 = vmatpush1.msra.mxu0 0.0
          %681 = vmatprep.subr.mxu0 0.0
          %682 = vmatpush1.msra.mxu0 0.0
          %683 = vmatprep.subr.mxu0 0.0
          %684 = vmatpush1.msra.mxu0 0.0
          %685 = vmatprep.subr.mxu0 0.0
          %686 = vmatpush1.msra.mxu0 0.0
          %687 = vmatprep.subr.mxu0 0.0
          %688 = vmatpush1.msra.mxu0 0.0
          %689 = vmatprep.subr.mxu0 0.0
          %690 = vmatpush1.msra.mxu0 0.0
          %691 = vmatprep.subr.mxu0 0.0
          %692 = vmatpush1.msra.mxu0 0.0
          %693 = vmatprep.subr.mxu0 0.0
          %694 = vmatpush1.msra.mxu0 0.0
          %695 = vmatprep.subr.mxu0 %v663
          %696 = vmatpush1.msra.mxu0 %v660
          %697 = vmatprep.subr.mxu0 0.0
          %698 = vmatpush2.msra.mxu0 0.0
          %699 = vmatprep.subr.mxu0 0.0
          %700 = vmatpush2.msra.mxu0 0.0
          %701 = vmatprep.subr.mxu0 0.0
          %702 = vmatpush2.msra.mxu0 0.0
          %703 = vmatprep.subr.mxu0 0.0
          %704 = vmatpush2.msra.mxu0 0.0
          %705 = vmatprep.subr.mxu0 0.0
          %706 = vmatpush2.msra.mxu0 0.0
          %707 = vmatprep.subr.mxu0 0.0
          %708 = vmatpush2.msra.mxu0 0.0
          %709 = vmatprep.subr.mxu0 0.0
          %710 = vmatpush2.msra.mxu0 0.0
          %711 = vmatprep.subr.mxu0 0.0
          %712 = vmatpush2.msra.mxu0 0.0
          %713 = vmatprep.subr.mxu0 0.0
          %714 = vmatpush2.msra.mxu0 0.0
          %715 = vmatprep.subr.mxu0 0.0
          %716 = vmatpush2.msra.mxu0 0.0
          %717 = vmatprep.subr.mxu0 0.0
          %718 = vmatpush2.msra.mxu0 0.0
          %719 = vmatprep.subr.mxu0 0.0
          %720 = vmatpush2.msra.mxu0 0.0
          %721 = vmatprep.subr.mxu0 0.0
          %722 = vmatpush2.msra.mxu0 0.0
          %723 = vmatprep.subr.mxu0 0.0
          %724 = vmatpush2.msra.mxu0 0.0
          %725 = vmatprep.subr.mxu0 0.0
          %726 = vmatpush2.msra.mxu0 0.0
          %727 = vmatprep.subr.mxu0 0.0
          %728 = vmatpush2.msra.mxu0 0.0
          %729 = vmatprep.mubr.f32.mxu0 0.0
          %730 = vmatmul.mubr.f32.gmra.mxu0 %v653
          %v731 = vpop.f32.mrf.mxu0
          %v732 = vadd.f32 0.0, %v731
          %v733 = vpop.f32.mrf.mxu0
          %v734 = vadd.f32 0.0, %v733
          %735 = vmatprep.mubr.f32.mxu0 0.0
          %736 = vmatmul.mubr.f32.gmra.mxu0 %v656
          %v737 = vpop.f32.mrf.mxu0
          %v738 = vadd.f32 0.0, %v737
          %v739 = vpop.f32.mrf.mxu0
          %v740 = vadd.f32 0.0, %v739
          %741 = vdwg.mxu0
          %v742 = vld [vmem:[#allocation3] sm:$0xff]
          %v743 = vld [vmem:[#allocation3 + $0x8] sm:$0xff]
          %v744 = vld [vmem:[#allocation4] sm:$0xff]
          %v745 = vld [vmem:[#allocation4 + $0x8] sm:$0xff]
          %v746 = vld [vmem:[#allocation4 + $0x10] sm:$0xff]
          %v747 = vld [vmem:[#allocation4 + $0x18] sm:$0xff]
          %v748 = vld [vmem:[#allocation4 + $0x20] sm:$0xff]
          %v749 = vld [vmem:[#allocation4 + $0x28] sm:$0xff]
          %v750 = vld [vmem:[#allocation4 + $0x30] sm:$0xff]
          %v751 = vld [vmem:[#allocation4 + $0x38] sm:$0xff]
          %v752 = vld [vmem:[#allocation4 + $0x40] sm:$0xff]
          %v753 = vld [vmem:[#allocation4 + $0x48] sm:$0xff]
          %v754 = vld [vmem:[#allocation4 + $0x50] sm:$0xff]
          %v755 = vld [vmem:[#allocation4 + $0x58] sm:$0xff]
          %v756 = vld [vmem:[#allocation4 + $0x60] sm:$0xff]
          %v757 = vld [vmem:[#allocation4 + $0x68] sm:$0xff]
          %v758 = vld [vmem:[#allocation4 + $0x70] sm:$0xff]
          %v759 = vld [vmem:[#allocation4 + $0x78] sm:$0xff]
          %760 = vmatprep.subr.mxu0 0.0
          %761 = vmatpush1.msra.mxu0 %v759
          %762 = vmatprep.subr.mxu0 0.0
          %763 = vmatpush1.msra.mxu0 %v758
          %764 = vmatprep.subr.mxu0 0.0
          %765 = vmatpush1.msra.mxu0 %v757
          %766 = vmatprep.subr.mxu0 0.0
          %767 = vmatpush1.msra.mxu0 %v756
          %768 = vmatprep.subr.mxu0 0.0
          %769 = vmatpush1.msra.mxu0 %v755
          %770 = vmatprep.subr.mxu0 0.0
          %771 = vmatpush1.msra.mxu0 %v754
          %772 = vmatprep.subr.mxu0 0.0
          %773 = vmatpush1.msra.mxu0 %v753
          %774 = vmatprep.subr.mxu0 0.0
          %775 = vmatpush1.msra.mxu0 %v752
          %776 = vmatprep.subr.mxu0 0.0
          %777 = vmatpush1.msra.mxu0 %v751
          %778 = vmatprep.subr.mxu0 0.0
          %779 = vmatpush1.msra.mxu0 %v750
          %780 = vmatprep.subr.mxu0 0.0
          %781 = vmatpush1.msra.mxu0 %v749
          %782 = vmatprep.subr.mxu0 0.0
          %783 = vmatpush1.msra.mxu0 %v748
          %784 = vmatprep.subr.mxu0 0.0
          %785 = vmatpush1.msra.mxu0 %v747
          %786 = vmatprep.subr.mxu0 0.0
          %787 = vmatpush1.msra.mxu0 %v746
          %788 = vmatprep.subr.mxu0 0.0
          %789 = vmatpush1.msra.mxu0 %v745
          %790 = vmatprep.subr.mxu0 0.0
          %791 = vmatpush1.msra.mxu0 %v744
          %792 = vmatprep.subr.mxu0 0.0
          %793 = vmatpush2.msra.mxu0 0.0
          %794 = vmatprep.subr.mxu0 0.0
          %795 = vmatpush2.msra.mxu0 0.0
          %796 = vmatprep.subr.mxu0 0.0
          %797 = vmatpush2.msra.mxu0 0.0
          %798 = vmatprep.subr.mxu0 0.0
          %799 = vmatpush2.msra.mxu0 0.0
          %800 = vmatprep.subr.mxu0 0.0
          %801 = vmatpush2.msra.mxu0 0.0
          %802 = vmatprep.subr.mxu0 0.0
          %803 = vmatpush2.msra.mxu0 0.0
          %804 = vmatprep.subr.mxu0 0.0
          %805 = vmatpush2.msra.mxu0 0.0
          %806 = vmatprep.subr.mxu0 0.0
          %807 = vmatpush2.msra.mxu0 0.0
          %808 = vmatprep.subr.mxu0 0.0
          %809 = vmatpush2.msra.mxu0 0.0
          %810 = vmatprep.subr.mxu0 0.0
          %811 = vmatpush2.msra.mxu0 0.0
          %812 = vmatprep.subr.mxu0 0.0
          %813 = vmatpush2.msra.mxu0 0.0
          %814 = vmatprep.subr.mxu0 0.0
          %815 = vmatpush2.msra.mxu0 0.0
          %816 = vmatprep.subr.mxu0 0.0
          %817 = vmatpush2.msra.mxu0 0.0
          %818 = vmatprep.subr.mxu0 0.0
          %819 = vmatpush2.msra.mxu0 0.0
          %820 = vmatprep.subr.mxu0 0.0
          %821 = vmatpush2.msra.mxu0 0.0
          %822 = vmatprep.subr.mxu0 0.0
          %823 = vmatpush2.msra.mxu0 0.0
          %824 = vmatprep.mubr.f32.mxu0 0.0
          %825 = vmatmul.mubr.f32.gmra.mxu0 %v742
          %v826 = vpop.f32.mrf.mxu0
          %v827 = vadd.f32 0.0, %v826
          %v828 = vpop.f32.mrf.mxu0
          %829 = vmatprep.mubr.f32.mxu0 0.0
          %830 = vmatmul.mubr.f32.gmra.mxu0 %v743
          %v831 = vpop.f32.mrf.mxu0
          %v832 = vadd.f32 0.0, %v831
          %v833 = vpop.f32.mrf.mxu0
          %834 = vdwg.mxu0
          %v835 = vadd.f32 %v732, %v827
          %v836 = vadd.f32 %v738, %v832
          %v837 = vmax.f32 %v835, 0.0
          %v838 = vmax.f32 %v836, 0.0
          %v839 = vadd.f32 %v734, %v837
          %v840 = vadd.f32 %v740, %v838
          %841 = vst [vmem:[#allocation7] sm:$0xff] %v839
          %842 = vst [vmem:[#allocation7 + $0x8] sm:$0xff] %v840
        $region64: #{tpu_custom_call.1} parent=51 // pred_fallthru
          _
        // Predicated region
        $region65: #{tpu_custom_call.1} parent=51 // pred_check
          %p843 = pneg %p217
        $region66: #{tpu_custom_call.1} parent=51 // pred_check_branch
          %845 = sbr.rel (%p843) target = $region68
        $region67: #{tpu_custom_call.1} parent=51 // pred_region
          %s847 = ssub.s32 256, 256
          %848 = vsyncadd [#allocation6], %s847
          %s849 = sshll.u32 [#allocation7], 4
          %s850 = int_to_ptr.vmem [resolvable:$true] %s849
          %855 = dma.vmem_to_hbm [thread:$0]  %s850, 256, %s8, [#allocation6], 128, 128, 8
        $region68: #{tpu_custom_call.1} parent=51 // pred_fallthru
          _
        // Predicated region
        $region69: #{tpu_custom_call.1} parent=51 // pred_check
          %p856 = pneg %p217
        $region70: #{tpu_custom_call.1} parent=51 // pred_check_branch
          %858 = sbr.rel (%p856) target = $region72
        $region71: #{tpu_custom_call.1} parent=51 // pred_region
          %859 = dma.done [#allocation6], 256
        $region72: #{tpu_custom_call.1} parent=51 // pred_fallthru
          _
      $region52: #{tpu_custom_call.1} parent=5 // pred_fallthru
        _
      %p860 = scmp.le.s32.totalorder 2, %s16
      // Predicated region
      $region73: #{tpu_custom_call.1} parent=5 // pred_check
        %p861 = pneg %p860
      $region74: #{tpu_custom_call.1} parent=5 // pred_check_branch
        %863 = sbr.rel (%p861) target = $region76
      $region75: #{tpu_custom_call.1} parent=5 // pred_region
        %s864 = ssub.s32 %s16, 2
      $region76: #{tpu_custom_call.1} parent=5 // pred_fallthru
        _
    $region6: #{tpu_custom_call.1} parent=1 // loop_footer
      %s20 = sadd.s32 1, %s16
    $region7: #{tpu_custom_call.1} parent=1 // loop_footer_branch
      %15 = sbr.rel target = $region3
    $region8: #{tpu_custom_call.1} parent=1 // loop_exit
      _
    %865 = vsyncpa [#allocation5], 1
    %s866 = scalar_lea.sflag [#allocation5], 1
    %867 = vsyncpa %s866, 1
    %868 = vsyncpa [#allocation6], 1
    %s869 = scalar_lea.sflag [#allocation6], 1
    %870 = vsyncpa %s869, 1

</llo_original>
